<compile_context>
chip_gen: v7x
topology: tpu7x:2x2x1
jax: 0.10.0
libtpu: 0.0.40
codegen_flags: <defaults>
</compile_context>

<pallas_src>
import functools

import jax
import jax.numpy as jnp
from jax import lax
from jax.experimental import pallas as pl
from jax.experimental.pallas import tpu as pltpu


def _dot_attention_kernel(q_ref, k_ref, ctx_ref, w_ref, *, mxu_bf16):
    """One grid step: (B_BLK, TQ_TILE) query rows against the full key set."""
    q = q_ref[...]          # (B_BLK, TQ_TILE, H)
    k = k_ref[...]          # (B_BLK, Tk, H)

    # bf16 MXU operands (f32 accumulation) only when explicitly requested.
    mm_dtype = jnp.bfloat16 if (mxu_bf16 and q.dtype == jnp.float32) else q.dtype

    # scores[b, q, t] = sum_h q[b, q, h] * k[b, t, h]
    # Contraction on the shared H axis -> no transposed (XLU) copy of k.
    scores = lax.dot_general(
        q.astype(mm_dtype), k.astype(mm_dtype),
        dimension_numbers=(((2,), (2,)), ((0,), (0,))),
        preferred_element_type=jnp.float32,
    )

    # Numerically stable, EXACT softmax over the key axis (rows sum to 1,
    # matching torch.softmax; no approx reciprocal in the stored weights).
    m = jnp.max(scores, axis=-1, keepdims=True)
    e = jnp.exp(scores - m)
    denom = jnp.sum(e, axis=-1, keepdims=True)
    weights = e / denom

    w_ref[...] = weights.astype(w_ref.dtype)

    # context[b, q, h] = sum_t weights[b, q, t] * k[b, t, h]
    ctx = lax.dot_general(
        weights.astype(mm_dtype), k.astype(mm_dtype),
        dimension_numbers=(((2,), (1,)), ((0,), (0,))),
        preferred_element_type=jnp.float32,
    )
    ctx_ref[...] = ctx.astype(ctx_ref.dtype)


def _pick_tiles(B, Tq, Tk, H, in_itemsize, budget_bytes):
    """Choose (b_blk, tq_tile) so the real working set fits the VMEM budget."""
    F32 = 4

    def step_bytes(b_blk, tq):
        # Pipelined I/O blocks (q, keys, context, weights), double-buffered.
        io = 2 * b_blk * (tq * H + Tk * H + tq * H + tq * Tk) * in_itemsize
        # Live f32 intermediates (scores + exp/weights + context accum) are
        # f32 regardless of input dtype -> must be budgeted too.
        tmp = b_blk * (2 * tq * Tk + tq * H) * F32
        return io + tmp

    # All sublane-aligned (multiple of 8) divisors of Tq, plus Tq itself,
    # largest first.
    tq_cands = sorted(
        {d for d in range(1, Tq + 1) if Tq % d == 0 and (d % 8 == 0 or d == Tq)},
        reverse=True,
    )
    tq_tile = tq_cands[-1]
    for cand in tq_cands:
        if step_bytes(1, cand) <= budget_bytes:
            tq_tile = cand
            break

    # Batch packing only amortizes the ~0.35us/step overhead; it does NOT fill
    # MXU lanes (the batched dot_general serializes over b_blk).  Only grow
    # b_blk when tq_tile is already at its floor, and keep grid[0] >= 2 when
    # possible so the batch axis can be sharded across v7x's 2 TensorCores.
    b_blk = 1
    b_cap = max(1, B // 2) if B >= 2 else 1
    if tq_tile >= min(Tq, 128):
        for cand in range(b_cap, 0, -1):
            if B % cand == 0 and step_bytes(cand, tq_tile) <= budget_bytes:
                b_blk = cand
                break

    return b_blk, tq_tile, step_bytes(b_blk, tq_tile)


def dot_attention(query, keys, *, vmem_budget_bytes=24 * 1024 * 1024,
                  mxu_bf16=False):
    """query: [B, Tq, H], keys: [B, Tk, H]
    -> (context [B, Tq, H], weights [B, Tq, Tk])."""
    B, Tq, H = query.shape
    Bk, Tk, Hk = keys.shape
    assert B == Bk and H == Hk, "query/keys batch & hidden dims must match"

    in_itemsize = jnp.dtype(query.dtype).itemsize
    b_blk, tq_tile, working_set = _pick_tiles(
        B, Tq, Tk, H, in_itemsize, vmem_budget_bytes)

    grid = (B // b_blk, Tq // tq_tile)

    # Raise the scoped-VMEM limit to cover the chosen working set (+headroom),
    # capped at 64 MiB so the request is valid on v5e/v6e (128 MiB physical)
    # and v7x (64 MiB per TC).
    vmem_limit_bytes = int(min(max(working_set + (8 << 20), 32 << 20), 64 << 20))

    out_shapes = (
        jax.ShapeDtypeStruct((B, Tq, H), query.dtype),    # context
        jax.ShapeDtypeStruct((B, Tq, Tk), query.dtype),   # weights
    )

    grid_spec = pltpu.PrefetchScalarGridSpec(
        num_scalar_prefetch=0,
        grid=grid,
        in_specs=[
            # query: tiled over (batch block, Tq tile).
            pl.BlockSpec((b_blk, tq_tile, H), lambda b, qi: (b, qi, 0)),
            # keys: index_map constant across qi -> DMA'd once per batch block
            # and kept resident in VMEM for all Tq tiles.
            pl.BlockSpec((b_blk, Tk, H), lambda b, qi: (b, 0, 0)),
        ],
        out_specs=[
            pl.BlockSpec((b_blk, tq_tile, H), lambda b, qi: (b, qi, 0)),
            pl.BlockSpec((b_blk, tq_tile, Tk), lambda b, qi: (b, qi, 0)),
        ],
    )

    kernel = functools.partial(_dot_attention_kernel, mxu_bf16=mxu_bf16)

    return pl.pallas_call(
        kernel,
        out_shape=out_shapes,
        grid_spec=grid_spec,
        compiler_params=pltpu.CompilerParams(
            # Batch axis parallel (v7x megacore sharding without breaking the
            # K residency); q-tile axis arbitrary (K fetched once per batch
            # block).
            dimension_semantics=("parallel", "arbitrary"),
            vmem_limit_bytes=vmem_limit_bytes,
        ),
    )(query, keys)


def _reference(query, keys):
    scores = jnp.einsum("bqh,bkh->bqk", query, keys,
                        precision=lax.Precision.HIGHEST)
    weights = jax.nn.softmax(scores, axis=-1)
    context = jnp.einsum("bqk,bkh->bqh", weights, keys,
                         precision=lax.Precision.HIGHEST)
    return context, weights


if __name__ == "__main__":
    # Small shapes consistent with the module: batch=2, Tq=8, Tk=8, hidden=32.
    B, Tq, Tk, H = 2, 8, 8, 32
    key = jax.random.PRNGKey(0)
    kq, kk = jax.random.split(key)
    query = jax.random.normal(kq, (B, Tq, H), dtype=jnp.float32)
    keys = jax.random.normal(kk, (B, Tk, H), dtype=jnp.float32)

    context, weights = dot_attention(query, keys)
    context = jax.block_until_ready(context)
    weights = jax.block_until_ready(weights)

    ctx_ref, w_ref = _reference(query, keys)
    assert jnp.allclose(context, ctx_ref, atol=1e-3, rtol=1e-3), "context mismatch"
    assert jnp.allclose(weights, w_ref, atol=1e-3, rtol=1e-3), "weights mismatch"
    # softmax rows must sum to 1 exactly-ish (no approx reciprocal anymore).
    assert jnp.allclose(jnp.sum(weights, axis=-1), 1.0, atol=1e-5)

    print("KERNEL_OK")
</pallas_src>

<mosaic_0001>
module attributes {stable_mosaic.version = 11 : i64} {
  func.func @_dot_attention_kernel(%arg0: i32, %arg1: i32, %arg2: memref<1x8x32xf32, #tpu.memory_space<vmem>>, %arg3: memref<1x8x32xf32, #tpu.memory_space<vmem>>, %arg4: memref<1x8x32xf32, #tpu.memory_space<vmem>>, %arg5: memref<1x8x8xf32, #tpu.memory_space<vmem>>) attributes {dimension_semantics = [#tpu.dimension_semantics<parallel>, #tpu.dimension_semantics<arbitrary>], iteration_bounds = array<i64: 2, 1>, scalar_prefetch = 0 : i64, scratch_operands = 0 : i64, tpu.core_type = #tpu.core_type<tc>, window_params = [{transform_indices = @transform_0, window_bounds = array<i64: 1, 8, 32>}, {transform_indices = @transform_1, window_bounds = array<i64: 1, 8, 32>}, {transform_indices = @transform_2, window_bounds = array<i64: 1, 8, 32>}, {transform_indices = @transform_3, window_bounds = array<i64: 1, 8, 8>}]} {
    %c0 = arith.constant 0 : index
    %c0_0 = arith.constant 0 : index
    %c0_1 = arith.constant 0 : index
    %0 = vector.load %arg2[%c0, %c0_0, %c0_1] : memref<1x8x32xf32, #tpu.memory_space<vmem>>, vector<1x8x32xf32>
    %c0_2 = arith.constant 0 : index
    %c0_3 = arith.constant 0 : index
    %c0_4 = arith.constant 0 : index
    %1 = vector.load %arg3[%c0_2, %c0_3, %c0_4] : memref<1x8x32xf32, #tpu.memory_space<vmem>>, vector<1x8x32xf32>
    %cst = arith.constant dense<0.000000e+00> : vector<1x8x8xf32>
    %2 = tpu.matmul %0, %1, %cst {dimension_numbers = #tpu.dot_dimension_numbers<[2], [2], [1], [1], [0, 0, 0, 1, 1, 1], [0], [0]>} : vector<1x8x32xf32>, vector<1x8x32xf32>, vector<1x8x8xf32> -> vector<1x8x8xf32>
    %cst_5 = arith.constant dense<0xFF800000> : vector<1x8xf32>
    %3 = vector.multi_reduction <maximumf>, %2, %cst_5 [2] : vector<1x8x8xf32> to vector<1x8xf32>
    %4 = vector.shape_cast %3 : vector<1x8xf32> to vector<1x8x1xf32>
    %5 = vector.broadcast %4 : vector<1x8x1xf32> to vector<1x8x8xf32>
    %6 = arith.subf %2, %5 : vector<1x8x8xf32>
    %7 = math.exp %6 : vector<1x8x8xf32>
    %cst_6 = arith.constant dense<0.000000e+00> : vector<1x8xf32>
    %8 = vector.multi_reduction <add>, %7, %cst_6 [2] : vector<1x8x8xf32> to vector<1x8xf32>
    %9 = vector.shape_cast %8 : vector<1x8xf32> to vector<1x8x1xf32>
    %10 = vector.broadcast %9 : vector<1x8x1xf32> to vector<1x8x8xf32>
    %11 = arith.divf %7, %10 : vector<1x8x8xf32>
    %c0_7 = arith.constant 0 : index
    %c0_8 = arith.constant 0 : index
    %c0_9 = arith.constant 0 : index
    %12 = vector.load %arg5[%c0_7, %c0_8, %c0_9] : memref<1x8x8xf32, #tpu.memory_space<vmem>>, vector<1x8x8xf32>
    tpu.vector_store %arg5[%c0_7, %c0_8, %c0_9], %11 {strides = array<i32>} : memref<1x8x8xf32, #tpu.memory_space<vmem>>, vector<1x8x8xf32>,
    %cst_10 = arith.constant dense<0.000000e+00> : vector<1x8x32xf32>
    %13 = tpu.matmul %11, %1, %cst_10 {dimension_numbers = #tpu.dot_dimension_numbers<[2], [1], [1], [2], [0, 0, 0, 1, 1, 2], [0], [0]>} : vector<1x8x8xf32>, vector<1x8x32xf32>, vector<1x8x32xf32> -> vector<1x8x32xf32>
    %c0_11 = arith.constant 0 : index
    %c0_12 = arith.constant 0 : index
    %c0_13 = arith.constant 0 : index
    %14 = vector.load %arg4[%c0_11, %c0_12, %c0_13] : memref<1x8x32xf32, #tpu.memory_space<vmem>>, vector<1x8x32xf32>
    tpu.vector_store %arg4[%c0_11, %c0_12, %c0_13], %13 {strides = array<i32>} : memref<1x8x32xf32, #tpu.memory_space<vmem>>, vector<1x8x32xf32>,
    return
  }
  func.func @transform_0(%arg0: i32, %arg1: i32) -> (i32, i32, i32) {
    %c0_i32 = arith.constant 0 : i32
    %c0_i32_0 = arith.constant 0 : i32
    return %arg0, %arg1, %c0_i32 : i32, i32, i32
  }
  func.func @transform_1(%arg0: i32, %arg1: i32) -> (i32, i32, i32) {
    %c0_i32 = arith.constant 0 : i32
    %c0_i32_0 = arith.constant 0 : i32
    %c0_i32_1 = arith.constant 0 : i32
    return %arg0, %c0_i32, %c0_i32_0 : i32, i32, i32
  }
  func.func @transform_2(%arg0: i32, %arg1: i32) -> (i32, i32, i32) {
    %c0_i32 = arith.constant 0 : i32
    %c0_i32_0 = arith.constant 0 : i32
    return %arg0, %arg1, %c0_i32 : i32, i32, i32
  }
  func.func @transform_3(%arg0: i32, %arg1: i32) -> (i32, i32, i32) {
    %c0_i32 = arith.constant 0 : i32
    %c0_i32_0 = arith.constant 0 : i32
    return %arg0, %arg1, %c0_i32 : i32, i32, i32
  }
}

</mosaic_0001>

<llo_original>
// kernel: tpu_custom_call.1
$region0: #{tpu_custom_call.1}
  #allocation0 [shape = 'u32[]', space=smem, size = 0x4, offset = 0x4, fixed_abs, tag = 'smem constant byte address 0x4 - core index']
  #allocation1 [shape = 'u32[144,128]{1,0:T(1,128)}', space=vmem, size = 0x12000, scoped, tag = 'internal scratch']
  %s0 = inlined_call_operand.hbm [shape: f32[2,8,32], index: 0, kind: input, shape index: {}]
  %s1 = inlined_call_operand.hbm [shape: f32[2,8,32], index: 1, kind: input, shape index: {}]
  %s2 = inlined_call_operand.hbm [shape: f32[2,8,32], index: 2, kind: output, shape index: {0}]
  %s3 = inlined_call_operand.hbm [shape: f32[2,8,8], index: 3, kind: output, shape index: {1}]
  %4 = xla_tuple %s2, %s3
  %s5 = sld [smem:[#allocation0]]
  $region57: #{tpu_custom_call.1} parent=0
    _
  %s7 = ssub.s32 1, %s5
  %s8 = scalar_select 0, %s7, %s5
  $region1: #{tpu_custom_call.1} parent=0
    #allocation2 [shape = 'u8[8192]{0}', space=vmem, size = 0x2000, scoped, tag = 'input window, operand 0']
    #allocation3 [shape = 's32[2]{0}', space=sflag, size = 0x8, scoped, tag = 'scoped memory for tpu_custom_call.1']
    #allocation4 [shape = 's32[2]{0}', space=sflag, size = 0x8, scoped, tag = 'scoped memory for tpu_custom_call.1']
    #allocation5 [shape = 'u8[8192]{0}', space=vmem, size = 0x2000, scoped, tag = 'input window, operand 1']
    #allocation6 [shape = 's32[2]{0}', space=sflag, size = 0x8, scoped, tag = 'scoped memory for tpu_custom_call.1']
    #allocation7 [shape = 'u8[8192]{0}', space=vmem, size = 0x2000, scoped, tag = 'output window, operand 0']
    #allocation8 [shape = 'u8[8192]{0}', space=vmem, size = 0x2000, scoped, tag = 'output window, operand 1']
    #allocation9 [shape = 's32[2]{0}', space=sflag, size = 0x8, scoped, tag = 'scoped memory for tpu_custom_call.1']
    %9 = vsyncpa [#allocation3], 0
    %s10 = scalar_lea.sflag [#allocation3], 1
    %11 = vsyncpa %s10, 0
    %12 = vsyncpa [#allocation6], 0
    %s13 = scalar_lea.sflag [#allocation6], 1
    %14 = vsyncpa %s13, 0
    %15 = vsyncpa [#allocation4], 0
    %s16 = scalar_lea.sflag [#allocation4], 1
    %17 = vsyncpa %s16, 0
    %18 = vsyncpa [#allocation9], 0
    %s19 = scalar_lea.sflag [#allocation9], 1
    %20 = vsyncpa %s19, 0
    loop: start=0, step=1, limit=4
    $region2: #{tpu_custom_call.1} parent=1 // loop_pre_header
      _
    $region3: #{tpu_custom_call.1} parent=1 // loop_header
      %s22 = sphi 0, %s26
      %p23 = scmp.ge.s32.totalorder %s22, 4
      %s29 = sphi 0, %s41
      %s30 = sphi 0, %s37
      %s31 = sphi 0, %s29
      %s32 = sphi 0, %s30
      %s33 = sphi 0, %s31
      %s34 = sphi 0, %s32
      %s46 = sphi 0, %s48
      %s49 = sphi 0, %s46
      %s50 = sphi 0, %s49
      %s66 = sphi 0, %s50
      %s72 = sphi 0, %s74
      %s75 = sphi 0, %s72
      %s76 = sphi 0, %s75
      %s92 = sphi 0, %s76
      %s100 = sphi 0, %s102
      %s103 = sphi 0, %s100
      %s104 = sphi 0, %s103
      %s120 = sphi 0, %s104
      %s128 = sphi 0, %s130
      %s131 = sphi 0, %s128
      %s132 = sphi 0, %s131
      %s148 = sphi 0, %s132
    $region4: #{tpu_custom_call.1} parent=1 // loop_header_branch
      %25 = sbr.rel (%p23) target = $region8
    $region5: #{tpu_custom_call.1} parent=1 // loop_body
      %s27 = ssub.s32 %s22, 1
      %s28 = ssub.s32 %s22, 2
      %s35 = sadd.s32 1, %s30
      %p36 = scmp.ge.s32.totalorder %s35, 1
      %s37 = scalar_select %p36, 0, %s35
      %s38 = sadd.s32 1, %s29
      %s39 = scalar_select %p36, %s38, %s29
      %p40 = scmp.ge.s32.totalorder %s39, 2
      %s41 = scalar_select %p40, 0, %s39
      %s42 = ssub.s32 %s29, %s41
      %s43 = ssub.s32 %s30, %s37
      %s44 = sor.u32 %s42, %s43
      %p45 = scmp.eq.s32.totalorder %s44, 0
      %s47 = sadd.s32 %s46, 1
      %s48 = scalar_select %p45, %s46, %s47
      %p51 = pneg %p45
      %p52 = scmp.eq.s32.totalorder %s22, 1
      %p53 = por %p51, %p52
      %p54 = scmp.ne.s32.totalorder %s46, %s49
      %p55 = scmp.eq.s32.totalorder %s22, 0
      %p56 = por %p54, %p55
      %p57 = scmp.ne.s32.totalorder %s46, %s49
      %p58 = scmp.eq.s32.totalorder %s27, 1
      %p59 = por %p57, %p58
      %p60 = scmp.ne.s32.totalorder %s49, %s50
      %p61 = scmp.eq.s32.totalorder %s27, 0
      %p62 = por %p60, %p61
      %p63 = scmp.ne.s32.totalorder %s49, %s50
      %p64 = scmp.eq.s32.totalorder %s28, 1
      %p65 = por %p63, %p64
      %p67 = scmp.ne.s32.totalorder %s50, %s66
      %p68 = scmp.eq.s32.totalorder %s28, 0
      %p69 = por %p67, %p68
      %s70 = ssub.s32 %s29, %s41
      %p71 = scmp.eq.s32.totalorder %s70, 0
      %s73 = sadd.s32 %s72, 1
      %s74 = scalar_select %p71, %s72, %s73
      %p77 = pneg %p71
      %p78 = scmp.eq.s32.totalorder %s22, 1
      %p79 = por %p77, %p78
      %p80 = scmp.ne.s32.totalorder %s72, %s75
      %p81 = scmp.eq.s32.totalorder %s22, 0
      %p82 = por %p80, %p81
      %p83 = scmp.ne.s32.totalorder %s72, %s75
      %p84 = scmp.eq.s32.totalorder %s27, 1
      %p85 = por %p83, %p84
      %p86 = scmp.ne.s32.totalorder %s75, %s76
      %p87 = scmp.eq.s32.totalorder %s27, 0
      %p88 = por %p86, %p87
      %p89 = scmp.ne.s32.totalorder %s75, %s76
      %p90 = scmp.eq.s32.totalorder %s28, 1
      %p91 = por %p89, %p90
      %p93 = scmp.ne.s32.totalorder %s76, %s92
      %p94 = scmp.eq.s32.totalorder %s28, 0
      %p95 = por %p93, %p94
      %s96 = ssub.s32 %s29, %s41
      %s97 = ssub.s32 %s30, %s37
      %s98 = sor.u32 %s96, %s97
      %p99 = scmp.eq.s32.totalorder %s98, 0
      %s101 = sadd.s32 %s100, 1
      %s102 = scalar_select %p99, %s100, %s101
      %p105 = pneg %p99
      %p106 = scmp.eq.s32.totalorder %s22, 1
      %p107 = por %p105, %p106
      %p108 = scmp.ne.s32.totalorder %s100, %s103
      %p109 = scmp.eq.s32.totalorder %s22, 0
      %p110 = por %p108, %p109
      %p111 = scmp.ne.s32.totalorder %s100, %s103
      %p112 = scmp.eq.s32.totalorder %s27, 1
      %p113 = por %p111, %p112
      %p114 = scmp.ne.s32.totalorder %s103, %s104
      %p115 = scmp.eq.s32.totalorder %s27, 0
      %p116 = por %p114, %p115
      %p117 = scmp.ne.s32.totalorder %s103, %s104
      %p118 = scmp.eq.s32.totalorder %s28, 1
      %p119 = por %p117, %p118
      %p121 = scmp.ne.s32.totalorder %s104, %s120
      %p122 = scmp.eq.s32.totalorder %s28, 0
      %p123 = por %p121, %p122
      %s124 = ssub.s32 %s29, %s41
      %s125 = ssub.s32 %s30, %s37
      %s126 = sor.u32 %s124, %s125
      %p127 = scmp.eq.s32.totalorder %s126, 0
      %s129 = sadd.s32 %s128, 1
      %s130 = scalar_select %p127, %s128, %s129
      %p133 = pneg %p127
      %p134 = scmp.eq.s32.totalorder %s22, 1
      %p135 = por %p133, %p134
      %p136 = scmp.ne.s32.totalorder %s128, %s131
      %p137 = scmp.eq.s32.totalorder %s22, 0
      %p138 = por %p136, %p137
      %p139 = scmp.ne.s32.totalorder %s128, %s131
      %p140 = scmp.eq.s32.totalorder %s27, 1
      %p141 = por %p139, %p140
      %p142 = scmp.ne.s32.totalorder %s131, %s132
      %p143 = scmp.eq.s32.totalorder %s27, 0
      %p144 = por %p142, %p143
      %p145 = scmp.ne.s32.totalorder %s131, %s132
      %p146 = scmp.eq.s32.totalorder %s28, 1
      %p147 = por %p145, %p146
      %p149 = scmp.ne.s32.totalorder %s132, %s148
      %p150 = scmp.eq.s32.totalorder %s28, 0
      %p151 = por %p149, %p150
      %p152 = scmp.le.s32.totalorder 1, %s22
      %p153 = scmp.lt.s32.totalorder %s22, 3
      %p154 = pnand %p152, %p153
      %p155 = pneg %p154
      // Predicated region
      $region9: #{tpu_custom_call.1} parent=5 // pred_check
        _
      $region10: #{tpu_custom_call.1} parent=5 // pred_check_branch
        %157 = sbr.rel (%p154) target = $region12
      $region11: #{tpu_custom_call.1} parent=5 // pred_region
        %s158 = ssub.s32 %s22, 1
      $region12: #{tpu_custom_call.1} parent=5 // pred_fallthru
        _
      %p159 = scmp.lt.s32.totalorder %s22, 2
      // Predicated region
      $region13: #{tpu_custom_call.1} parent=5 // pred_check
        %p160 = pneg %p159
      $region14: #{tpu_custom_call.1} parent=5 // pred_check_branch
        %162 = sbr.rel (%p160) target = $region16
      $region15: #{tpu_custom_call.1} parent=5 // pred_region
        // Predicated region
        $region17: #{tpu_custom_call.1} parent=15 // pred_check
          %p163 = pneg %p56
        $region18: #{tpu_custom_call.1} parent=15 // pred_check_branch
          %165 = sbr.rel (%p163) target = $region20
        $region19: #{tpu_custom_call.1} parent=15 // pred_region
          %s166 = sand.u32 %s46, 1
          %s167 = scalar_lea.sflag [#allocation3], %s166
          %s168 = sand.u32 %s46, 1
          %s169 = smul.addr %s168, 8
          %s170 = scalar_lea.vmem [#allocation2], %s169
          %s172 = ssub.s32 128, 128
          %173 = vsyncadd %s167, %s172
          %s174 = sadd.s32 %s30, %s29
          %s175 = smul.addr %s174, 128
          %s176 = scalar_lea.hbm %s0, %s175
          %s178 = sshll.u32 %s170, 4
          %s179 = int_to_ptr.vmem [resolvable:$true] %s178
          %181 = dma.hbm_to_vmem [thread:$0]  %s176, 128, %s179, %s167
        $region20: #{tpu_custom_call.1} parent=15 // pred_fallthru
          _
        // Predicated region
        $region21: #{tpu_custom_call.1} parent=15 // pred_check
          %p182 = pneg %p82
        $region22: #{tpu_custom_call.1} parent=15 // pred_check_branch
          %184 = sbr.rel (%p182) target = $region24
        $region23: #{tpu_custom_call.1} parent=15 // pred_region
          %s185 = sand.u32 %s72, 1
          %s186 = scalar_lea.sflag [#allocation6], %s185
          %s187 = sand.u32 %s72, 1
          %s188 = smul.addr %s187, 8
          %s189 = scalar_lea.vmem [#allocation5], %s188
          %s191 = ssub.s32 128, 128
          %192 = vsyncadd %s186, %s191
          %s193 = smul.addr %s29, 128
          %s194 = scalar_lea.hbm %s1, %s193
          %s196 = sshll.u32 %s189, 4
          %s197 = int_to_ptr.vmem [resolvable:$true] %s196
          %199 = dma.hbm_to_vmem [thread:$0]  %s194, 128, %s197, %s186
        $region24: #{tpu_custom_call.1} parent=15 // pred_fallthru
          _
      $region16: #{tpu_custom_call.1} parent=5 // pred_fallthru
        _
      %p200 = scmp.le.s32.totalorder 1, %s22
      %p201 = scmp.lt.s32.totalorder %s22, 3
      %p202 = pnand %p200, %p201
      %p203 = pneg %p202
      // Predicated region
      $region25: #{tpu_custom_call.1} parent=5 // pred_check
        _
      $region26: #{tpu_custom_call.1} parent=5 // pred_check_branch
        %205 = sbr.rel (%p202) target = $region28
      $region27: #{tpu_custom_call.1} parent=5 // pred_region
        %s206 = ssub.s32 %s22, 1
        %s207 = sand.u32 %s49, 1
        %s208 = scalar_lea.sflag [#allocation3], %s207
        %s209 = sand.u32 %s49, 1
        %s210 = smul.addr %s209, 8
        %s211 = scalar_lea.vmem [#allocation2], %s210
        // Predicated region
        $region29: #{tpu_custom_call.1} parent=27 // pred_check
          %p212 = pneg %p62
        $region30: #{tpu_custom_call.1} parent=27 // pred_check_branch
          %214 = sbr.rel (%p212) target = $region32
        $region31: #{tpu_custom_call.1} parent=27 // pred_region
          %215 = dma.done %s208, 128
        $region32: #{tpu_custom_call.1} parent=27 // pred_fallthru
          _
        %s216 = sand.u32 %s75, 1
        %s217 = scalar_lea.sflag [#allocation6], %s216
        %s218 = sand.u32 %s75, 1
        %s219 = smul.addr %s218, 8
        %s220 = scalar_lea.vmem [#allocation5], %s219
        // Predicated region
        $region33: #{tpu_custom_call.1} parent=27 // pred_check
          %p221 = pneg %p88
        $region34: #{tpu_custom_call.1} parent=27 // pred_check_branch
          %223 = sbr.rel (%p221) target = $region36
        $region35: #{tpu_custom_call.1} parent=27 // pred_region
          %224 = dma.done %s217, 128
        $region36: #{tpu_custom_call.1} parent=27 // pred_fallthru
          _
        %s225 = sand.u32 %s49, 1
        %s226 = scalar_lea.sflag [#allocation3], %s225
        %s227 = sand.u32 %s49, 1
        %s228 = smul.addr %s227, 8
        %s229 = scalar_lea.vmem [#allocation2], %s228
        %p230 = pneg %p62
        %p231 = pneg %p59
        %s232 = sand.u32 %s75, 1
        %s233 = scalar_lea.sflag [#allocation6], %s232
        %s234 = sand.u32 %s75, 1
        %s235 = smul.addr %s234, 8
        %s236 = scalar_lea.vmem [#allocation5], %s235
        %p237 = pneg %p88
        %p238 = pneg %p85
        %p239 = pneg %p116
        %p240 = pneg %p113
        %s241 = sand.u32 %s103, 1
        %s242 = scalar_lea.sflag [#allocation4], %s241
        %s243 = sand.u32 %s103, 1
        %s244 = smul.addr %s243, 8
        %s245 = scalar_lea.vmem [#allocation7], %s244
        %p246 = pneg %p144
        %p247 = pneg %p141
        %s248 = sand.u32 %s131, 1
        %s249 = scalar_lea.sflag [#allocation9], %s248
        %s250 = sand.u32 %s131, 1
        %s251 = smul.addr %s250, 8
        %s252 = scalar_lea.vmem [#allocation8], %s251
        %v253 = vld [vmem:[%s211] sm:$0xff]
        %v254 = vld [vmem:[%s220] sm:$0xff]
        %vm255 = vcmask 261120
        %v257 = vsel %vm255, %v253, 0
        %v260 = vsel %vm255, %v254, 0
        %262 = vmatprep.subr.mxu0 0.0
        %263 = vmatpush1.xpose.msra.mxu0 %v260
        %264 = vmatprep.subr.mxu0 0.0
        %265 = vmatpush1.xpose.msra.mxu0 0.0
        %266 = vmatprep.subr.mxu0 0.0
        %267 = vmatpush1.xpose.msra.mxu0 0.0
        %268 = vmatprep.subr.mxu0 0.0
        %269 = vmatpush1.xpose.msra.mxu0 0.0
        %270 = vmatprep.subr.mxu0 0.0
        %271 = vmatpush1.xpose.msra.mxu0 0.0
        %272 = vmatprep.subr.mxu0 0.0
        %273 = vmatpush1.xpose.msra.mxu0 0.0
        %274 = vmatprep.subr.mxu0 0.0
        %275 = vmatpush1.xpose.msra.mxu0 0.0
        %276 = vmatprep.subr.mxu0 0.0
        %277 = vmatpush1.xpose.msra.mxu0 0.0
        %278 = vmatprep.subr.mxu0 0.0
        %279 = vmatpush1.xpose.msra.mxu0 0.0
        %280 = vmatprep.subr.mxu0 0.0
        %281 = vmatpush1.xpose.msra.mxu0 0.0
        %282 = vmatprep.subr.mxu0 0.0
        %283 = vmatpush1.xpose.msra.mxu0 0.0
        %284 = vmatprep.subr.mxu0 0.0
        %285 = vmatpush1.xpose.msra.mxu0 0.0
        %286 = vmatprep.subr.mxu0 0.0
        %287 = vmatpush1.xpose.msra.mxu0 0.0
        %288 = vmatprep.subr.mxu0 0.0
        %289 = vmatpush1.xpose.msra.mxu0 0.0
        %290 = vmatprep.subr.mxu0 0.0
        %291 = vmatpush1.xpose.msra.mxu0 0.0
        %292 = vmatprep.subr.mxu0 0.0
        %293 = vmatpush1.xpose.msra.mxu0 0.0
        %294 = vmatprep.subr.mxu0 0.0
        %295 = vmatpush1.xpose.msra.mxu0 0.0
        %296 = vmatprep.subr.mxu0 0.0
        %297 = vmatpush1.xpose.msra.mxu0 0.0
        %298 = vmatprep.subr.mxu0 0.0
        %299 = vmatpush1.xpose.msra.mxu0 0.0
        %300 = vmatprep.subr.mxu0 0.0
        %301 = vmatpush1.xpose.msra.mxu0 0.0
        %302 = vmatprep.subr.mxu0 0.0
        %303 = vmatpush1.xpose.msra.mxu0 0.0
        %304 = vmatprep.subr.mxu0 0.0
        %305 = vmatpush1.xpose.msra.mxu0 0.0
        %306 = vmatprep.subr.mxu0 0.0
        %307 = vmatpush1.xpose.msra.mxu0 0.0
        %308 = vmatprep.subr.mxu0 0.0
        %309 = vmatpush1.xpose.msra.mxu0 0.0
        %310 = vmatprep.subr.mxu0 0.0
        %311 = vmatpush1.xpose.msra.mxu0 0.0
        %312 = vmatprep.subr.mxu0 0.0
        %313 = vmatpush1.xpose.msra.mxu0 0.0
        %314 = vmatprep.subr.mxu0 0.0
        %315 = vmatpush1.xpose.msra.mxu0 0.0
        %316 = vmatprep.subr.mxu0 0.0
        %317 = vmatpush1.xpose.msra.mxu0 0.0
        %318 = vmatprep.subr.mxu0 0.0
        %319 = vmatpush1.xpose.msra.mxu0 0.0
        %320 = vmatprep.subr.mxu0 0.0
        %321 = vmatpush1.xpose.msra.mxu0 0.0
        %322 = vmatprep.subr.mxu0 0.0
        %323 = vmatpush1.xpose.msra.mxu0 0.0
        %324 = vmatprep.subr.mxu0 0.0
        %325 = vmatpush1.xpose.msra.mxu0 0.0
        %326 = vmatprep.mubr.f32.mxu0 0.0
        %327 = vmatmul.mubr.f32.gmra.mrb[0].mxu0 %v257
        %v328 = vpop.f32.mrb[0].mxu0
        %v329 = vadd.f32 0.0, %v328
        %v330 = vpop.f32.mrb[0].mxu0
        %331 = vdwg.mxu0
        %vm332 = vcmask 64512
        %v333 = vsel %vm332, %v329, -inf
        %334 = vmax.xlane.f32.xlu0 %v333
        %v335 = vpop.xlane.xlu0 %334
        %v336 = vsub.f32 %v329, %v335
        %v337 = vmul.f32 %v336, 1.442695
        %v338 = vpow.pop %v337
        %v339 = vsel %vm332, %v338, 0.0
        %340 = vadd.xlane.f32.xlu0 %v339
        %v341 = vpop.xlane.xlu0 %340
        %v342 = vrcp.pop %v341
        %v343 = vmul.f32 %v338, %v342
        %344 = vst.msk [vmem:[%s252] sm:$0xff] %vm332, %v343
        %v346 = vsel %vm332, %v343, 0
        %348 = vmatprep.subr.mxu0 0.0
        %349 = vmatpush1.msra.mxu0 %v254
        %350 = vmatprep.subr.mxu0 0.0
        %351 = vmatpush1.msra.mxu0 0.0
        %352 = vmatprep.subr.mxu0 0.0
        %353 = vmatpush1.msra.mxu0 0.0
        %354 = vmatprep.subr.mxu0 0.0
        %355 = vmatpush1.msra.mxu0 0.0
        %356 = vmatprep.subr.mxu0 0.0
        %357 = vmatpush1.msra.mxu0 0.0
        %358 = vmatprep.subr.mxu0 0.0
        %359 = vmatpush1.msra.mxu0 0.0
        %360 = vmatprep.subr.mxu0 0.0
        %361 = vmatpush1.msra.mxu0 0.0
        %362 = vmatprep.subr.mxu0 0.0
        %363 = vmatpush1.msra.mxu0 0.0
        %364 = vmatprep.subr.mxu0 0.0
        %365 = vmatpush1.msra.mxu0 0.0
        %366 = vmatprep.subr.mxu0 0.0
        %367 = vmatpush1.msra.mxu0 0.0
        %368 = vmatprep.subr.mxu0 0.0
        %369 = vmatpush1.msra.mxu0 0.0
        %370 = vmatprep.subr.mxu0 0.0
        %371 = vmatpush1.msra.mxu0 0.0
        %372 = vmatprep.subr.mxu0 0.0
        %373 = vmatpush1.msra.mxu0 0.0
        %374 = vmatprep.subr.mxu0 0.0
        %375 = vmatpush1.msra.mxu0 0.0
        %376 = vmatprep.subr.mxu0 0.0
        %377 = vmatpush1.msra.mxu0 0.0
        %378 = vmatprep.subr.mxu0 0.0
        %379 = vmatpush1.msra.mxu0 0.0
        %380 = vmatprep.subr.mxu0 0.0
        %381 = vmatpush1.msra.mxu0 0.0
        %382 = vmatprep.subr.mxu0 0.0
        %383 = vmatpush1.msra.mxu0 0.0
        %384 = vmatprep.subr.mxu0 0.0
        %385 = vmatpush1.msra.mxu0 0.0
        %386 = vmatprep.subr.mxu0 0.0
        %387 = vmatpush1.msra.mxu0 0.0
        %388 = vmatprep.subr.mxu0 0.0
        %389 = vmatpush1.msra.mxu0 0.0
        %390 = vmatprep.subr.mxu0 0.0
        %391 = vmatpush1.msra.mxu0 0.0
        %392 = vmatprep.subr.mxu0 0.0
        %393 = vmatpush1.msra.mxu0 0.0
        %394 = vmatprep.subr.mxu0 0.0
        %395 = vmatpush1.msra.mxu0 0.0
        %396 = vmatprep.subr.mxu0 0.0
        %397 = vmatpush1.msra.mxu0 0.0
        %398 = vmatprep.subr.mxu0 0.0
        %399 = vmatpush1.msra.mxu0 0.0
        %400 = vmatprep.subr.mxu0 0.0
        %401 = vmatpush1.msra.mxu0 0.0
        %402 = vmatprep.subr.mxu0 0.0
        %403 = vmatpush1.msra.mxu0 0.0
        %404 = vmatprep.subr.mxu0 0.0
        %405 = vmatpush1.msra.mxu0 0.0
        %406 = vmatprep.subr.mxu0 0.0
        %407 = vmatpush1.msra.mxu0 0.0
        %408 = vmatprep.subr.mxu0 0.0
        %409 = vmatpush1.msra.mxu0 0.0
        %410 = vmatprep.subr.mxu0 0.0
        %411 = vmatpush1.msra.mxu0 0.0
        %412 = vmatprep.mubr.f32.mxu0 0.0
        %413 = vmatmul.mubr.f32.gmra.mrb[0].mxu0 %v346
        %v414 = vpop.f32.mrb[0].mxu0
        %v415 = vadd.f32 0.0, %v414
        %v416 = vpop.f32.mrb[0].mxu0
        %417 = vdwg.mxu0
        %418 = vst.msk [vmem:[%s245] sm:$0xff] %vm255, %v415
        %s419 = sand.u32 %s103, 1
        %s420 = scalar_lea.sflag [#allocation4], %s419
        %s421 = sand.u32 %s103, 1
        %s422 = smul.addr %s421, 8
        %s423 = scalar_lea.vmem [#allocation7], %s422
        %s424 = sand.u32 %s131, 1
        %s425 = scalar_lea.sflag [#allocation9], %s424
        %s426 = sand.u32 %s131, 1
        %s427 = smul.addr %s426, 8
        %s428 = scalar_lea.vmem [#allocation8], %s427
        // Predicated region
        $region37: #{tpu_custom_call.1} parent=27 // pred_check
          %p429 = pneg %p113
        $region38: #{tpu_custom_call.1} parent=27 // pred_check_branch
          %431 = sbr.rel (%p429) target = $region40
        $region39: #{tpu_custom_call.1} parent=27 // pred_region
          %s433 = ssub.s32 128, 128
          %434 = vsyncadd %s420, %s433
          %s435 = sadd.s32 %s32, %s31
          %s436 = smul.addr %s435, 128
          %s437 = scalar_lea.hbm %s2, %s436
          %s439 = sshll.u32 %s423, 4
          %s440 = int_to_ptr.vmem [resolvable:$true] %s439
          %442 = dma.vmem_to_hbm [thread:$0]  %s440, 128, %s437, %s420
        $region40: #{tpu_custom_call.1} parent=27 // pred_fallthru
          _
        // Predicated region
        $region41: #{tpu_custom_call.1} parent=27 // pred_check
          %p443 = pneg %p141
        $region42: #{tpu_custom_call.1} parent=27 // pred_check_branch
          %445 = sbr.rel (%p443) target = $region44
        $region43: #{tpu_custom_call.1} parent=27 // pred_region
          %s447 = ssub.s32 128, 128
          %448 = vsyncadd %s425, %s447
          %s449 = sadd.s32 %s32, %s31
          %s450 = smul.addr %s449, 128
          %s451 = scalar_lea.hbm %s3, %s450
          %s453 = sshll.u32 %s428, 4
          %s454 = int_to_ptr.vmem [resolvable:$true] %s453
          %456 = dma.vmem_to_hbm [thread:$0]  %s454, 128, %s451, %s425
        $region44: #{tpu_custom_call.1} parent=27 // pred_fallthru
          _
      $region28: #{tpu_custom_call.1} parent=5 // pred_fallthru
        _
      %p457 = scmp.le.s32.totalorder 2, %s22
      // Predicated region
      $region45: #{tpu_custom_call.1} parent=5 // pred_check
        %p458 = pneg %p457
      $region46: #{tpu_custom_call.1} parent=5 // pred_check_branch
        %460 = sbr.rel (%p458) target = $region48
      $region47: #{tpu_custom_call.1} parent=5 // pred_region
        %s461 = ssub.s32 %s22, 2
        // Predicated region
        $region49: #{tpu_custom_call.1} parent=47 // pred_check
          %p462 = pneg %p119
        $region50: #{tpu_custom_call.1} parent=47 // pred_check_branch
          %464 = sbr.rel (%p462) target = $region52
        $region51: #{tpu_custom_call.1} parent=47 // pred_region
          %s465 = sand.u32 %s104, 1
          %s466 = scalar_lea.sflag [#allocation4], %s465
          %s467 = sand.u32 %s104, 1
          %s468 = smul.addr %s467, 8
          %s469 = scalar_lea.vmem [#allocation7], %s468
          %470 = dma.done %s466, 128
        $region52: #{tpu_custom_call.1} parent=47 // pred_fallthru
          _
        // Predicated region
        $region53: #{tpu_custom_call.1} parent=47 // pred_check
          %p471 = pneg %p147
        $region54: #{tpu_custom_call.1} parent=47 // pred_check_branch
          %473 = sbr.rel (%p471) target = $region56
        $region55: #{tpu_custom_call.1} parent=47 // pred_region
          %s474 = sand.u32 %s132, 1
          %s475 = scalar_lea.sflag [#allocation9], %s474
          %s476 = sand.u32 %s132, 1
          %s477 = smul.addr %s476, 8
          %s478 = scalar_lea.vmem [#allocation8], %s477
          %479 = dma.done %s475, 128
        $region56: #{tpu_custom_call.1} parent=47 // pred_fallthru
          _
      $region48: #{tpu_custom_call.1} parent=5 // pred_fallthru
        _
    $region6: #{tpu_custom_call.1} parent=1 // loop_footer
      %s26 = sadd.s32 1, %s22
    $region7: #{tpu_custom_call.1} parent=1 // loop_footer_branch
      %21 = sbr.rel target = $region3
    $region8: #{tpu_custom_call.1} parent=1 // loop_exit
      _
    %480 = vsyncpa [#allocation3], 1
    %s481 = scalar_lea.sflag [#allocation3], 1
    %482 = vsyncpa %s481, 1
    %483 = vsyncpa [#allocation6], 1
    %s484 = scalar_lea.sflag [#allocation6], 1
    %485 = vsyncpa %s484, 1
    %486 = vsyncpa [#allocation4], 1
    %s487 = scalar_lea.sflag [#allocation4], 1
    %488 = vsyncpa %s487, 1
    %489 = vsyncpa [#allocation9], 1
    %s490 = scalar_lea.sflag [#allocation9], 1
    %491 = vsyncpa %s490, 1

</llo_original>
